<compile_context>
chip_gen: v6e
topology: v6e:2x2x1
jax: 0.10.0
libtpu: 0.0.40
codegen_flags: <defaults>
</compile_context>

<pallas_src>
import functools

import jax
import jax.numpy as jnp
from jax import lax
from jax.experimental import pallas as pl
from jax.experimental.pallas import tpu as pltpu


# ------------------------------ fused LN + conv kernel ------------------------------

def _ln_conv_kernel(x_ref, w_ref, b_ref, o_ref, xn_ref, *, n_taps, c1, eps, mm_dtype):
    """One (batch, spatial-tile) grid step.

    x_ref : (k*k*C1, TM)  space-to-depth taps (tap-major, channel-minor), output
                          positions on the lane dim
    w_ref : (C2, k*k*C1)  conv weight with the LN scale folded in (VMEM resident)
    b_ref : (C2, 1)       conv bias with the LN shift folded in (VMEM resident)
    o_ref : (C2, TM)      output tile (NCHW layout, lane-dense)
    xn_ref: (k*k*C1, TM)  VMEM scratch holding the normalized taps (mm_dtype)
    """
    inv_c1 = 1.0 / c1
    # LayerNorm each tap's (C1, TM) slab with one-pass stats and park the normalized
    # values in scratch.  Stats are per input pixel; for k == s every input pixel
    # belongs to exactly one tap, so nothing is recomputed.
    for tap in range(n_taps):
        rows = pl.ds(tap * c1, c1)
        xg = x_ref[rows, :].astype(jnp.float32)                       # (C1, TM)
        s1 = jnp.sum(xg, axis=0, keepdims=True)                       # (1, TM)
        s2 = jnp.sum(xg * xg, axis=0, keepdims=True)                  # (1, TM)
        mean = s1 * inv_c1
        var = jnp.maximum(s2 * inv_c1 - mean * mean, 0.0)
        xn_ref[rows, :] = ((xg - mean) * lax.rsqrt(var + eps)).astype(mm_dtype)
    # Single fused MXU contraction over K = k*k*C1 (instead of k*k small matmuls + adds).
    acc = jnp.dot(w_ref[...], xn_ref[...], preferred_element_type=jnp.float32)
    o_ref[...] = (acc + b_ref[...]).astype(o_ref.dtype)


# ----------------------------------- wrapper glue -----------------------------------

def _make_taps(x, k, s, d, merge_batch):
    """Return taps of shape (Bdim, k*k*C, L):
      taps[b', (kh*k + kw)*C + c, l] = x[b, c, ho*s + kh*d, wo*s + kw*d]
    with (merge_batch=False): b' = b, l = ho*Wo + wo
         (merge_batch=True):  b' = 0, l = b*Ho*Wo + ho*Wo + wo
    """
    B, C, H, W = x.shape
    Ho = (H - d * (k - 1) - 1) // s + 1
    Wo = (W - d * (k - 1) - 1) // s + 1
    if k == s and d == 1:
        # Non-overlapping downsample: pure space-to-depth, a single XLA transpose.
        Hs, Ws = Ho * s, Wo * s
        if (Hs, Ws) != (H, W):
            x = x[:, :, :Hs, :Ws]
        t = x.reshape(B, C, Ho, s, Wo, s).transpose(3, 5, 1, 0, 2, 4)   # (kh,kw,C,B,Ho,Wo)
        t = t.reshape(k * k, C, B, Ho, Wo)
    else:
        # Generic (overlapping) gather fallback for k != s or dilation > 1.
        cols = []
        for kh in range(k):
            for kw in range(k):
                h0, w0 = kh * d, kw * d
                sl = x[:, :, h0:h0 + s * (Ho - 1) + 1:s, w0:w0 + s * (Wo - 1) + 1:s]
                cols.append(sl.transpose(1, 0, 2, 3))                   # (C,B,Ho,Wo)
        t = jnp.stack(cols, axis=0)                                     # (k*k,C,B,Ho,Wo)
    if merge_batch:
        taps = t.reshape(1, k * k * C, B * Ho * Wo)
    else:
        taps = t.transpose(2, 0, 1, 3, 4).reshape(B, k * k * C, Ho * Wo)
    return taps, Ho, Wo


def _vmem_capacity_bytes():
    try:
        cap = getattr(pltpu.get_tpu_info(), "vmem_capacity_bytes", None)
        if cap:
            return int(cap)
    except Exception:
        pass
    return 64 * 2 ** 20      # conservative default (v7x per-TC VMEM)


def _pick_spatial_tile(n_lanes, per_pos_bytes, fixed_bytes, budget_bytes):
    """Largest divisor of n_lanes that is a multiple of 128 (or n_lanes itself, i.e. the
    full lane-dense dim) fitting the VMEM budget (resident bytes included)."""
    cands = {n_lanes}
    t = 128
    while t < n_lanes:
        if n_lanes % t == 0:
            cands.add(t)
        t += 128
    for t in sorted(cands, reverse=True):
        if fixed_bytes + t * per_pos_bytes <= budget_bytes:
            return t
    return min(cands)


def convnext_downsample(x, params, *, k, s, d=1, groups=1, eps=1e-6, mm_dtype=None):
    """forward: conv(ln(x)), matching the PyTorch ConvNeXt_Downsample module (NCHW)."""
    if groups != 1:
        # TODO(synk): grouped convolution (g > 1) not supported in the Pallas matmul path.
        raise NotImplementedError("groups > 1 is not supported")
    B, C1, H, W = x.shape
    conv_w, conv_b = params["conv_w"], params["conv_b"]
    ln_w, ln_b = params["ln_w"], params["ln_b"]
    C2 = conv_w.shape[0]

    if mm_dtype is None:
        # bf16 MXU rate is several x the f32 rate on every generation; stats/accum stay f32.
        mm_dtype = jnp.bfloat16 if jnp.issubdtype(x.dtype, jnp.floating) else x.dtype
    mm_dtype = jnp.dtype(mm_dtype)
    x_dtype = jnp.dtype(x.dtype)
    tap_dtype = mm_dtype if mm_dtype.itemsize < x_dtype.itemsize else x_dtype

    n_taps = k * k
    KC = n_taps * C1

    # ---- fold LN affine into the conv (tiny, done once; exact because padding == 0) ----
    w_fold = conv_w * ln_w[None, :, None, None]                       # (C2, C1, k, k)
    b_fold = conv_b + jnp.einsum("ocij,c->o", conv_w, ln_b)           # (C2,)
    w2d = w_fold.transpose(0, 2, 3, 1).reshape(C2, KC).astype(mm_dtype)   # (C2, k*k*C1)
    b_col = b_fold.reshape(C2, 1).astype(jnp.float32)

    # ---- patch extraction; fold batch onto the lane axis when Ho*Wo is not lane-dense ----
    Ho = (H - d * (k - 1) - 1) // s + 1
    Wo = (W - d * (k - 1) - 1) // s + 1
    n_pos = Ho * Wo
    merge_batch = (n_pos % 128 != 0) and B > 1
    xp, Ho, Wo = _make_taps(x, k, s, d, merge_batch)
    xp = xp.astype(tap_dtype)                                         # (Bdim, k*k*C1, L)
    Bdim, _, L = xp.shape

    # ---- generation-aware VMEM budget & lane-tile selection ----
    per_pos = (2 * KC * tap_dtype.itemsize       # double-buffered input tap block
               + KC * mm_dtype.itemsize          # normalized-tap scratch
               + 2 * C2 * x_dtype.itemsize       # double-buffered output block
               + 4 * (4 * C1 + C2))              # f32 LN temporaries + accumulator headroom
    fixed = (2 * C2 * KC * mm_dtype.itemsize     # resident (double-buffered) folded weights
             + 2 * C2 * 128 * 4                  # resident bias (lane-padded)
             + (2 << 20))                        # Mosaic internal-scratch headroom
    cap = _vmem_capacity_bytes()
    if cap >= 100 * 2 ** 20:                     # 128 MiB parts: v5e / v6e
        tile_budget, limit_cap = 48 * 2 ** 20, 80 * 2 ** 20
    else:                                        # 64 MiB-per-TC parts: v7x
        tile_budget, limit_cap = 24 * 2 ** 20, 36 * 2 ** 20
    tm = _pick_spatial_tile(L, per_pos, fixed, tile_budget)
    # v7x has 2 TensorCores: make sure the grid has >= 2 steps when possible.
    if Bdim * (L // tm) < 2:
        smaller = [t for t in range(128, tm, 128) if L % t == 0]
        if smaller:
            tm = max(smaller)
    est = fixed + tm * per_pos
    vmem_limit = int(min(max(2 * est, 32 * 2 ** 20), max(limit_cap, est + (4 << 20))))

    grid = (Bdim, L // tm)
    kern = functools.partial(_ln_conv_kernel, n_taps=n_taps, c1=C1, eps=eps,
                             mm_dtype=mm_dtype)
    out_flat = pl.pallas_call(
        kern,
        out_shape=jax.ShapeDtypeStruct((Bdim, C2, L), x_dtype),
        grid=grid,
        in_specs=[
            pl.BlockSpec((None, KC, tm), lambda b, i: (b, 0, i)),     # tap block
            pl.BlockSpec((C2, KC), lambda b, i: (0, 0)),              # resident weights
            pl.BlockSpec((C2, 1), lambda b, i: (0, 0)),               # resident bias
        ],
        out_specs=pl.BlockSpec((None, C2, tm), lambda b, i: (b, 0, i)),
        scratch_shapes=[pltpu.VMEM((KC, tm), mm_dtype)],
        compiler_params=pltpu.CompilerParams(
            dimension_semantics=("parallel", "parallel"),
            vmem_limit_bytes=vmem_limit,
            # Let XLA fuse the space-to-depth / cast producer into the kernel input
            # instead of materializing it in HBM (no-op if XLA declines the fusion).
            allow_input_fusion=[True, False, False],
        ),
    )(xp, w2d, b_col)

    if merge_batch:
        out = out_flat.reshape(C2, B, Ho, Wo).transpose(1, 0, 2, 3)
    else:
        out = out_flat.reshape(B, C2, Ho, Wo)
    return out


def init_params(key, c1, c2, k):
    k_w, k_b, k_g, k_s = jax.random.split(key, 4)
    fan_in = c1 * k * k
    bound = 1.0 / (fan_in ** 0.5)
    return {
        # non-trivial gamma/beta so the LN-affine folding is actually exercised
        "ln_w": 1.0 + 0.1 * jax.random.normal(k_g, (c1,), jnp.float32),
        "ln_b": 0.1 * jax.random.normal(k_s, (c1,), jnp.float32),
        "conv_w": jax.random.uniform(k_w, (c2, c1, k, k), jnp.float32, -bound, bound),
        "conv_b": jax.random.uniform(k_b, (c2,), jnp.float32, -bound, bound),
    }


def _reference(x, params, k, s, eps=1e-6):
    """Pure-JAX reference: same math as the PyTorch module (channels_first LN -> conv)."""
    u = x.mean(axis=1, keepdims=True)
    v = ((x - u) ** 2).mean(axis=1, keepdims=True)
    ln = params["ln_w"][None, :, None, None] * ((x - u) / jnp.sqrt(v + eps)) \
        + params["ln_b"][None, :, None, None]
    return lax.conv_general_dilated(
        ln, params["conv_w"], window_strides=(s, s), padding="VALID",
        dimension_numbers=("NCHW", "OIHW", "NCHW"),
    ) + params["conv_b"][None, :, None, None]


# --------------------------------------- main ---------------------------------------

if __name__ == "__main__":
    C1, C2, K, S = 4, 8, 2, 2          # typical ConvNeXt downsample: k=2, s=2

    key = jax.random.PRNGKey(0)
    kx1, kx2, kp = jax.random.split(key, 3)
    params = init_params(kp, C1, C2, K)

    # Case 1: small spatial (Ho*Wo = 64 < 128) -> batch folded onto the lane axis.
    x1 = jax.random.normal(kx1, (2, C1, 16, 16), jnp.float32)
    # Case 2: larger spatial (Ho*Wo = 256, multiple of 128) -> per-batch lane tiling.
    x2 = jax.random.normal(kx2, (2, C1, 32, 32), jnp.float32)

    fwd_bf16 = jax.jit(functools.partial(convnext_downsample, k=K, s=S))
    fwd_f32 = jax.jit(functools.partial(convnext_downsample, k=K, s=S,
                                        mm_dtype=jnp.float32))

    for x in (x1, x2):
        ref = _reference(x, params, K, S)

        out_f32 = jax.block_until_ready(fwd_f32(x, params))
        assert out_f32.shape == ref.shape, (out_f32.shape, ref.shape)
        err32 = float(jnp.abs(out_f32 - ref).max())
        assert jnp.allclose(out_f32, ref, atol=2e-3, rtol=2e-3), err32

        out_bf16 = jax.block_until_ready(fwd_bf16(x, params))   # default bf16 MXU path
        assert out_bf16.shape == ref.shape, (out_bf16.shape, ref.shape)
        errbf = float(jnp.abs(out_bf16 - ref).max())
        assert jnp.allclose(out_bf16, ref, atol=6e-2, rtol=6e-2), errbf

    print("KERNEL_OK")
</pallas_src>

<mosaic_0001>
module attributes {stable_mosaic.version = 11 : i64} {
  func.func @_ln_conv_kernel(%arg0: i32, %arg1: i32, %arg2: memref<1x16x128xf32, #tpu.memory_space<vmem>>, %arg3: memref<8x16xf32, #tpu.memory_space<vmem>>, %arg4: memref<8x1xf32, #tpu.memory_space<vmem>>, %arg5: memref<1x8x128xf32, #tpu.memory_space<vmem>>, %arg6: memref<16x128xf32, #tpu.memory_space<vmem>>) attributes {dimension_semantics = [#tpu.dimension_semantics<parallel>, #tpu.dimension_semantics<parallel>], iteration_bounds = array<i64: 1, 1>, scalar_prefetch = 0 : i64, scratch_operands = 1 : i64, tpu.core_type = #tpu.core_type<tc>, window_params = [{transform_indices = @transform_0, window_bounds = array<i64: 1, 16, 128>}, {pipeline_mode = #tpu.pipeline_mode<synchronous>, transform_indices = @transform_1, window_bounds = array<i64: 8, 16>}, {pipeline_mode = #tpu.pipeline_mode<synchronous>, transform_indices = @transform_2, window_bounds = array<i64: 8, 1>}, {transform_indices = @transform_3, window_bounds = array<i64: 1, 8, 128>}]} {
    %c0 = arith.constant 0 : index
    %c0_0 = arith.constant 0 : index
    %c0_1 = arith.constant 0 : index
    %0 = vector.load %arg2[%c0, %c0_0, %c0_1] : memref<1x16x128xf32, #tpu.memory_space<vmem>>, vector<1x4x128xf32>
    %1 = vector.shape_cast %0 : vector<1x4x128xf32> to vector<4x128xf32>
    %cst = arith.constant dense<0.000000e+00> : vector<128xf32>
    %2 = vector.multi_reduction <add>, %1, %cst [0] : vector<4x128xf32> to vector<128xf32>
    %3 = vector.shape_cast %2 : vector<128xf32> to vector<1x128xf32>
    %4 = arith.mulf %1, %1 : vector<4x128xf32>
    %cst_2 = arith.constant dense<0.000000e+00> : vector<128xf32>
    %5 = vector.multi_reduction <add>, %4, %cst_2 [0] : vector<4x128xf32> to vector<128xf32>
    %6 = vector.shape_cast %5 : vector<128xf32> to vector<1x128xf32>
    %cst_3 = arith.constant 2.500000e-01 : f32
    %7 = vector.broadcast %cst_3 : f32 to vector<1x128xf32>
    %8 = arith.mulf %3, %7 : vector<1x128xf32>
    %cst_4 = arith.constant 2.500000e-01 : f32
    %9 = vector.broadcast %cst_4 : f32 to vector<1x128xf32>
    %10 = arith.mulf %6, %9 : vector<1x128xf32>
    %11 = arith.mulf %8, %8 : vector<1x128xf32>
    %12 = arith.subf %10, %11 : vector<1x128xf32>
    %cst_5 = arith.constant 0.000000e+00 : f32
    %13 = vector.broadcast %cst_5 : f32 to vector<1x128xf32>
    %14 = arith.maximumf %12, %13 : vector<1x128xf32>
    %15 = vector.broadcast %8 : vector<1x128xf32> to vector<4x128xf32>
    %16 = arith.subf %1, %15 : vector<4x128xf32>
    %cst_6 = arith.constant 9.99999997E-7 : f32
    %17 = vector.broadcast %cst_6 : f32 to vector<1x128xf32>
    %18 = arith.addf %14, %17 : vector<1x128xf32>
    %19 = math.rsqrt %18 : vector<1x128xf32>
    %20 = vector.broadcast %19 : vector<1x128xf32> to vector<4x128xf32>
    %21 = arith.mulf %16, %20 : vector<4x128xf32>
    %c0_7 = arith.constant 0 : index
    %c0_8 = arith.constant 0 : index
    %22 = vector.load %arg6[%c0_7, %c0_8] : memref<16x128xf32, #tpu.memory_space<vmem>>, vector<4x128xf32>
    tpu.vector_store %arg6[%c0_7, %c0_8], %21 {strides = array<i32>} : memref<16x128xf32, #tpu.memory_space<vmem>>, vector<4x128xf32>,
    %c0_9 = arith.constant 0 : index
    %c4 = arith.constant 4 : index
    %c0_10 = arith.constant 0 : index
    %23 = vector.load %arg2[%c0_9, %c4, %c0_10] : memref<1x16x128xf32, #tpu.memory_space<vmem>>, vector<1x4x128xf32>
    %24 = vector.shape_cast %23 : vector<1x4x128xf32> to vector<4x128xf32>
    %cst_11 = arith.constant dense<0.000000e+00> : vector<128xf32>
    %25 = vector.multi_reduction <add>, %24, %cst_11 [0] : vector<4x128xf32> to vector<128xf32>
    %26 = vector.shape_cast %25 : vector<128xf32> to vector<1x128xf32>
    %27 = arith.mulf %24, %24 : vector<4x128xf32>
    %cst_12 = arith.constant dense<0.000000e+00> : vector<128xf32>
    %28 = vector.multi_reduction <add>, %27, %cst_12 [0] : vector<4x128xf32> to vector<128xf32>
    %29 = vector.shape_cast %28 : vector<128xf32> to vector<1x128xf32>
    %cst_13 = arith.constant 2.500000e-01 : f32
    %30 = vector.broadcast %cst_13 : f32 to vector<1x128xf32>
    %31 = arith.mulf %26, %30 : vector<1x128xf32>
    %cst_14 = arith.constant 2.500000e-01 : f32
    %32 = vector.broadcast %cst_14 : f32 to vector<1x128xf32>
    %33 = arith.mulf %29, %32 : vector<1x128xf32>
    %34 = arith.mulf %31, %31 : vector<1x128xf32>
    %35 = arith.subf %33, %34 : vector<1x128xf32>
    %cst_15 = arith.constant 0.000000e+00 : f32
    %36 = vector.broadcast %cst_15 : f32 to vector<1x128xf32>
    %37 = arith.maximumf %35, %36 : vector<1x128xf32>
    %38 = vector.broadcast %31 : vector<1x128xf32> to vector<4x128xf32>
    %39 = arith.subf %24, %38 : vector<4x128xf32>
    %cst_16 = arith.constant 9.99999997E-7 : f32
    %40 = vector.broadcast %cst_16 : f32 to vector<1x128xf32>
    %41 = arith.addf %37, %40 : vector<1x128xf32>
    %42 = math.rsqrt %41 : vector<1x128xf32>
    %43 = vector.broadcast %42 : vector<1x128xf32> to vector<4x128xf32>
    %44 = arith.mulf %39, %43 : vector<4x128xf32>
    %c4_17 = arith.constant 4 : index
    %c0_18 = arith.constant 0 : index
    %45 = vector.load %arg6[%c4_17, %c0_18] : memref<16x128xf32, #tpu.memory_space<vmem>>, vector<4x128xf32>
    tpu.vector_store %arg6[%c4_17, %c0_18], %44 {strides = array<i32>} : memref<16x128xf32, #tpu.memory_space<vmem>>, vector<4x128xf32>,
    %c0_19 = arith.constant 0 : index
    %c8 = arith.constant 8 : index
    %c0_20 = arith.constant 0 : index
    %46 = vector.load %arg2[%c0_19, %c8, %c0_20] : memref<1x16x128xf32, #tpu.memory_space<vmem>>, vector<1x4x128xf32>
    %47 = vector.shape_cast %46 : vector<1x4x128xf32> to vector<4x128xf32>
    %cst_21 = arith.constant dense<0.000000e+00> : vector<128xf32>
    %48 = vector.multi_reduction <add>, %47, %cst_21 [0] : vector<4x128xf32> to vector<128xf32>
    %49 = vector.shape_cast %48 : vector<128xf32> to vector<1x128xf32>
    %50 = arith.mulf %47, %47 : vector<4x128xf32>
    %cst_22 = arith.constant dense<0.000000e+00> : vector<128xf32>
    %51 = vector.multi_reduction <add>, %50, %cst_22 [0] : vector<4x128xf32> to vector<128xf32>
    %52 = vector.shape_cast %51 : vector<128xf32> to vector<1x128xf32>
    %cst_23 = arith.constant 2.500000e-01 : f32
    %53 = vector.broadcast %cst_23 : f32 to vector<1x128xf32>
    %54 = arith.mulf %49, %53 : vector<1x128xf32>
    %cst_24 = arith.constant 2.500000e-01 : f32
    %55 = vector.broadcast %cst_24 : f32 to vector<1x128xf32>
    %56 = arith.mulf %52, %55 : vector<1x128xf32>
    %57 = arith.mulf %54, %54 : vector<1x128xf32>
    %58 = arith.subf %56, %57 : vector<1x128xf32>
    %cst_25 = arith.constant 0.000000e+00 : f32
    %59 = vector.broadcast %cst_25 : f32 to vector<1x128xf32>
    %60 = arith.maximumf %58, %59 : vector<1x128xf32>
    %61 = vector.broadcast %54 : vector<1x128xf32> to vector<4x128xf32>
    %62 = arith.subf %47, %61 : vector<4x128xf32>
    %cst_26 = arith.constant 9.99999997E-7 : f32
    %63 = vector.broadcast %cst_26 : f32 to vector<1x128xf32>
    %64 = arith.addf %60, %63 : vector<1x128xf32>
    %65 = math.rsqrt %64 : vector<1x128xf32>
    %66 = vector.broadcast %65 : vector<1x128xf32> to vector<4x128xf32>
    %67 = arith.mulf %62, %66 : vector<4x128xf32>
    %c8_27 = arith.constant 8 : index
    %c0_28 = arith.constant 0 : index
    %68 = vector.load %arg6[%c8_27, %c0_28] : memref<16x128xf32, #tpu.memory_space<vmem>>, vector<4x128xf32>
    tpu.vector_store %arg6[%c8_27, %c0_28], %67 {strides = array<i32>} : memref<16x128xf32, #tpu.memory_space<vmem>>, vector<4x128xf32>,
    %c0_29 = arith.constant 0 : index
    %c12 = arith.constant 12 : index
    %c0_30 = arith.constant 0 : index
    %69 = vector.load %arg2[%c0_29, %c12, %c0_30] : memref<1x16x128xf32, #tpu.memory_space<vmem>>, vector<1x4x128xf32>
    %70 = vector.shape_cast %69 : vector<1x4x128xf32> to vector<4x128xf32>
    %cst_31 = arith.constant dense<0.000000e+00> : vector<128xf32>
    %71 = vector.multi_reduction <add>, %70, %cst_31 [0] : vector<4x128xf32> to vector<128xf32>
    %72 = vector.shape_cast %71 : vector<128xf32> to vector<1x128xf32>
    %73 = arith.mulf %70, %70 : vector<4x128xf32>
    %cst_32 = arith.constant dense<0.000000e+00> : vector<128xf32>
    %74 = vector.multi_reduction <add>, %73, %cst_32 [0] : vector<4x128xf32> to vector<128xf32>
    %75 = vector.shape_cast %74 : vector<128xf32> to vector<1x128xf32>
    %cst_33 = arith.constant 2.500000e-01 : f32
    %76 = vector.broadcast %cst_33 : f32 to vector<1x128xf32>
    %77 = arith.mulf %72, %76 : vector<1x128xf32>
    %cst_34 = arith.constant 2.500000e-01 : f32
    %78 = vector.broadcast %cst_34 : f32 to vector<1x128xf32>
    %79 = arith.mulf %75, %78 : vector<1x128xf32>
    %80 = arith.mulf %77, %77 : vector<1x128xf32>
    %81 = arith.subf %79, %80 : vector<1x128xf32>
    %cst_35 = arith.constant 0.000000e+00 : f32
    %82 = vector.broadcast %cst_35 : f32 to vector<1x128xf32>
    %83 = arith.maximumf %81, %82 : vector<1x128xf32>
    %84 = vector.broadcast %77 : vector<1x128xf32> to vector<4x128xf32>
    %85 = arith.subf %70, %84 : vector<4x128xf32>
    %cst_36 = arith.constant 9.99999997E-7 : f32
    %86 = vector.broadcast %cst_36 : f32 to vector<1x128xf32>
    %87 = arith.addf %83, %86 : vector<1x128xf32>
    %88 = math.rsqrt %87 : vector<1x128xf32>
    %89 = vector.broadcast %88 : vector<1x128xf32> to vector<4x128xf32>
    %90 = arith.mulf %85, %89 : vector<4x128xf32>
    %c12_37 = arith.constant 12 : index
    %c0_38 = arith.constant 0 : index
    %91 = vector.load %arg6[%c12_37, %c0_38] : memref<16x128xf32, #tpu.memory_space<vmem>>, vector<4x128xf32>
    tpu.vector_store %arg6[%c12_37, %c0_38], %90 {strides = array<i32>} : memref<16x128xf32, #tpu.memory_space<vmem>>, vector<4x128xf32>,
    %c0_39 = arith.constant 0 : index
    %c0_40 = arith.constant 0 : index
    %92 = vector.load %arg3[%c0_39, %c0_40] : memref<8x16xf32, #tpu.memory_space<vmem>>, vector<8x16xf32>
    %c0_41 = arith.constant 0 : index
    %c0_42 = arith.constant 0 : index
    %93 = vector.load %arg6[%c0_41, %c0_42] : memref<16x128xf32, #tpu.memory_space<vmem>>, vector<16x128xf32>
    %cst_43 = arith.constant dense<0.000000e+00> : vector<8x128xf32>
    %94 = tpu.matmul %92, %93, %cst_43 {dimension_numbers = #tpu.dot_dimension_numbers<[1], [0], [0], [1], [0, 0, 1, 1], [], []>} : vector<8x16xf32>, vector<16x128xf32>, vector<8x128xf32> -> vector<8x128xf32>
    %c0_44 = arith.constant 0 : index
    %c0_45 = arith.constant 0 : index
    %95 = vector.load %arg4[%c0_44, %c0_45] : memref<8x1xf32, #tpu.memory_space<vmem>>, vector<8x1xf32>
    %96 = vector.broadcast %95 : vector<8x1xf32> to vector<8x128xf32>
    %97 = arith.addf %94, %96 : vector<8x128xf32>
    %c0_46 = arith.constant 0 : index
    %c0_47 = arith.constant 0 : index
    %c0_48 = arith.constant 0 : index
    %98 = vector.load %arg5[%c0_46, %c0_47, %c0_48] : memref<1x8x128xf32, #tpu.memory_space<vmem>>, vector<1x8x128xf32>
    %99 = vector.shape_cast %98 : vector<1x8x128xf32> to vector<8x128xf32>
    %100 = vector.shape_cast %97 : vector<8x128xf32> to vector<1x8x128xf32>
    tpu.vector_store %arg5[%c0_46, %c0_47, %c0_48], %100 {strides = array<i32>} : memref<1x8x128xf32, #tpu.memory_space<vmem>>, vector<1x8x128xf32>,
    return
  }
  func.func @transform_0(%arg0: i32, %arg1: i32) -> (i32, i32, i32) {
    %c0_i32 = arith.constant 0 : i32
    %c0_i32_0 = arith.constant 0 : i32
    return %arg0, %c0_i32, %arg1 : i32, i32, i32
  }
  func.func @transform_1(%arg0: i32, %arg1: i32) -> (i32, i32) {
    %c0_i32 = arith.constant 0 : i32
    %c0_i32_0 = arith.constant 0 : i32
    %c0_i32_1 = arith.constant 0 : i32
    return %c0_i32, %c0_i32_0 : i32, i32
  }
  func.func @transform_2(%arg0: i32, %arg1: i32) -> (i32, i32) {
    %c0_i32 = arith.constant 0 : i32
    %c0_i32_0 = arith.constant 0 : i32
    %c0_i32_1 = arith.constant 0 : i32
    return %c0_i32, %c0_i32_0 : i32, i32
  }
  func.func @transform_3(%arg0: i32, %arg1: i32) -> (i32, i32, i32) {
    %c0_i32 = arith.constant 0 : i32
    %c0_i32_0 = arith.constant 0 : i32
    return %arg0, %c0_i32, %arg1 : i32, i32, i32
  }
}

</mosaic_0001>

<llo_original>
// kernel: convnext_downsample.1
$region0: #{convnext_downsample.1}
  #allocation0 [shape = 'u32[]', space=smem, size = 0x4, offset = 0x4, fixed_abs, tag = 'smem constant byte address 0x4 - core index']
  #allocation1 [shape = 'u32[144,128]{1,0:T(1,128)}', space=vmem, size = 0x12000, scoped, tag = 'internal scratch']
  #allocation2 [shape = 'f32[16,128]{1,0:T(8,128)}', space=vmem, size = 0x2000, scoped, tag = 'scratch operand']
  %s0 = inlined_call_operand.vmem [shape: f32[1,16,128], index: 0, kind: input, shape index: {}]
  %s1 = inlined_call_operand.vmem [shape: f32[8,16], index: 1, kind: input, shape index: {}]
  %s2 = inlined_call_operand.vmem [shape: f32[8,1], index: 2, kind: input, shape index: {}]
  %s3 = inlined_call_operand.vmem [shape: f32[1,8,128], index: 3, kind: output, shape index: {}]
  %s4 = sld [smem:[#allocation0]]
  $region22: #{convnext_downsample.1} parent=0
    _
  %s6 = ssub.s32 1, %s4
  %s7 = scalar_select 0, %s6, %s4
  // Predicated region
  $region2: #{convnext_downsample.1} parent=0 // pred_check
    _
  $region3: #{convnext_downsample.1} parent=0 // pred_check_branch
    %9 = sbr.rel (0) target = $region5
  $region4: #{convnext_downsample.1} parent=0 // pred_region
    _
  $region5: #{convnext_downsample.1} parent=0 // pred_fallthru
    _
  // Predicated region
  $region6: #{convnext_downsample.1} parent=0 // pred_check
    _
  $region7: #{convnext_downsample.1} parent=0 // pred_check_branch
    %11 = sbr.rel (0) target = $region9
  $region8: #{convnext_downsample.1} parent=0 // pred_region
    _
  $region9: #{convnext_downsample.1} parent=0 // pred_fallthru
    _
  // Predicated region
  $region10: #{convnext_downsample.1} parent=0 // pred_check
    _
  $region11: #{convnext_downsample.1} parent=0 // pred_check_branch
    %13 = sbr.rel (0) target = $region13
  $region12: #{convnext_downsample.1} parent=0 // pred_region
    _
  $region13: #{convnext_downsample.1} parent=0 // pred_fallthru
    _
  %v14 = vld [vmem:[%s0] sm:$0xf]
  %vm15 = vcmask 1043456
  %v16 = vsel %vm15, %v14, 0.0
  %v17 = vrot.slane %v16, 4
  %v18 = vadd.f32 %v16, %v17
  %v19 = vrot.slane %v18, 2
  %v20 = vadd.f32 %v18, %v19
  %v21 = vrot.slane %v20, 1
  %v22 = vadd.f32 %v20, %v21
  %v23 = vmul.f32 %v14, %v14
  %v24 = vsel %vm15, %v23, 0.0
  %v25 = vrot.slane %v24, 4
  %v26 = vadd.f32 %v24, %v25
  %v27 = vrot.slane %v26, 2
  %v28 = vadd.f32 %v26, %v27
  %v29 = vrot.slane %v28, 1
  %v30 = vadd.f32 %v28, %v29
  %v31 = vmul.f32 %v22, 0.25
  %v32 = vmul.f32 %v30, 0.25
  %v33 = vmul.f32 %v31, %v31
  %v34 = vsub.f32 %v32, %v33
  %v35 = vmax.f32 %v34, 0.0
  %v36 = vsub.f32 %v14, %v31
  %v37 = vadd.f32 %v35, 1e-06
  %v38 = vrsqrt.pop %v37
  %v39 = vmul.f32 %v36, %v38
  %40 = vst [vmem:[#allocation2] sm:$0xf] %v39
  %v41 = vld [vmem:[%s0 + $0x4] sm:$0xf]
  %v42 = vsel %vm15, %v41, 0.0
  %v43 = vrot.slane %v42, 4
  %v44 = vadd.f32 %v42, %v43
  %v45 = vrot.slane %v44, 2
  %v46 = vadd.f32 %v44, %v45
  %v47 = vrot.slane %v46, 1
  %v48 = vadd.f32 %v46, %v47
  %v49 = vmul.f32 %v41, %v41
  %v50 = vsel %vm15, %v49, 0.0
  %v51 = vrot.slane %v50, 4
  %v52 = vadd.f32 %v50, %v51
  %v53 = vrot.slane %v52, 2
  %v54 = vadd.f32 %v52, %v53
  %v55 = vrot.slane %v54, 1
  %v56 = vadd.f32 %v54, %v55
  %v57 = vmul.f32 %v48, 0.25
  %v58 = vmul.f32 %v56, 0.25
  %v59 = vmul.f32 %v57, %v57
  %v60 = vsub.f32 %v58, %v59
  %v61 = vmax.f32 %v60, 0.0
  %v62 = vsub.f32 %v41, %v57
  %v63 = vadd.f32 %v61, 1e-06
  %v64 = vrsqrt.pop %v63
  %v65 = vmul.f32 %v62, %v64
  %66 = vst [vmem:[#allocation2 + $0x4] sm:$0xf] %v65
  %v67 = vld [vmem:[%s0 + $0x8] sm:$0xf]
  %v68 = vsel %vm15, %v67, 0.0
  %v69 = vrot.slane %v68, 4
  %v70 = vadd.f32 %v68, %v69
  %v71 = vrot.slane %v70, 2
  %v72 = vadd.f32 %v70, %v71
  %v73 = vrot.slane %v72, 1
  %v74 = vadd.f32 %v72, %v73
  %v75 = vmul.f32 %v67, %v67
  %v76 = vsel %vm15, %v75, 0.0
  %v77 = vrot.slane %v76, 4
  %v78 = vadd.f32 %v76, %v77
  %v79 = vrot.slane %v78, 2
  %v80 = vadd.f32 %v78, %v79
  %v81 = vrot.slane %v80, 1
  %v82 = vadd.f32 %v80, %v81
  %v83 = vmul.f32 %v74, 0.25
  %v84 = vmul.f32 %v82, 0.25
  %v85 = vmul.f32 %v83, %v83
  %v86 = vsub.f32 %v84, %v85
  %v87 = vmax.f32 %v86, 0.0
  %v88 = vsub.f32 %v67, %v83
  %v89 = vadd.f32 %v87, 1e-06
  %v90 = vrsqrt.pop %v89
  %v91 = vmul.f32 %v88, %v90
  %92 = vst [vmem:[#allocation2 + $0x8] sm:$0xf] %v91
  %v93 = vld [vmem:[%s0 + $0xc] sm:$0xf]
  %v94 = vsel %vm15, %v93, 0.0
  %v95 = vrot.slane %v94, 4
  %v96 = vadd.f32 %v94, %v95
  %v97 = vrot.slane %v96, 2
  %v98 = vadd.f32 %v96, %v97
  %v99 = vrot.slane %v98, 1
  %v100 = vadd.f32 %v98, %v99
  %v101 = vmul.f32 %v93, %v93
  %v102 = vsel %vm15, %v101, 0.0
  %v103 = vrot.slane %v102, 4
  %v104 = vadd.f32 %v102, %v103
  %v105 = vrot.slane %v104, 2
  %v106 = vadd.f32 %v104, %v105
  %v107 = vrot.slane %v106, 1
  %v108 = vadd.f32 %v106, %v107
  %v109 = vmul.f32 %v100, 0.25
  %v110 = vmul.f32 %v108, 0.25
  %v111 = vmul.f32 %v109, %v109
  %v112 = vsub.f32 %v110, %v111
  %v113 = vmax.f32 %v112, 0.0
  %v114 = vsub.f32 %v93, %v109
  %v115 = vadd.f32 %v113, 1e-06
  %v116 = vrsqrt.pop %v115
  %v117 = vmul.f32 %v114, %v116
  %118 = vst [vmem:[#allocation2 + $0xc] sm:$0xf] %v117
  %v119 = vld [vmem:[%s1] sm:$0xff]
  %v120 = vld [vmem:[#allocation2] sm:$0xff]
  %v121 = vld [vmem:[#allocation2 + $0x8] sm:$0xff]
  %v122 = vld [vmem:[%s2] sm:$0xff]
  %124 = vset.pattern.permute.xlu0 0
  %125 = vperm.xlu0 %124, %v122
  %v126 = vpop.permute.xlu0 %125
  %vm128 = vcmask 130048
  %v130 = vsel %vm128, %v119, 0
  %132 = vmatprep.subr.mxu0 0.0
  %133 = vmatpush1.msra.mxu0 0.0
  %134 = vmatprep.subr.mxu0 0.0
  %135 = vmatpush1.msra.mxu0 0.0
  %136 = vmatprep.subr.mxu0 0.0
  %137 = vmatpush1.msra.mxu0 0.0
  %138 = vmatprep.subr.mxu0 0.0
  %139 = vmatpush1.msra.mxu0 0.0
  %140 = vmatprep.subr.mxu0 0.0
  %141 = vmatpush1.msra.mxu0 0.0
  %142 = vmatprep.subr.mxu0 0.0
  %143 = vmatpush1.msra.mxu0 0.0
  %144 = vmatprep.subr.mxu0 0.0
  %145 = vmatpush1.msra.mxu0 0.0
  %146 = vmatprep.subr.mxu0 0.0
  %147 = vmatpush1.msra.mxu0 0.0
  %148 = vmatprep.subr.mxu0 0.0
  %149 = vmatpush1.msra.mxu0 0.0
  %150 = vmatprep.subr.mxu0 0.0
  %151 = vmatpush1.msra.mxu0 0.0
  %152 = vmatprep.subr.mxu0 0.0
  %153 = vmatpush1.msra.mxu0 0.0
  %154 = vmatprep.subr.mxu0 0.0
  %155 = vmatpush1.msra.mxu0 0.0
  %156 = vmatprep.subr.mxu0 0.0
  %157 = vmatpush1.msra.mxu0 0.0
  %158 = vmatprep.subr.mxu0 0.0
  %159 = vmatpush1.msra.mxu0 0.0
  %160 = vmatprep.subr.mxu0 0.0
  %161 = vmatpush1.msra.mxu0 %v121
  %162 = vmatprep.subr.mxu0 0.0
  %163 = vmatpush1.msra.mxu0 %v120
  %164 = vmatprep.subr.mxu0 0.0
  %165 = vmatpush2.msra.mxu0 0.0
  %166 = vmatprep.subr.mxu0 0.0
  %167 = vmatpush2.msra.mxu0 0.0
  %168 = vmatprep.subr.mxu0 0.0
  %169 = vmatpush2.msra.mxu0 0.0
  %170 = vmatprep.subr.mxu0 0.0
  %171 = vmatpush2.msra.mxu0 0.0
  %172 = vmatprep.subr.mxu0 0.0
  %173 = vmatpush2.msra.mxu0 0.0
  %174 = vmatprep.subr.mxu0 0.0
  %175 = vmatpush2.msra.mxu0 0.0
  %176 = vmatprep.subr.mxu0 0.0
  %177 = vmatpush2.msra.mxu0 0.0
  %178 = vmatprep.subr.mxu0 0.0
  %179 = vmatpush2.msra.mxu0 0.0
  %180 = vmatprep.subr.mxu0 0.0
  %181 = vmatpush2.msra.mxu0 0.0
  %182 = vmatprep.subr.mxu0 0.0
  %183 = vmatpush2.msra.mxu0 0.0
  %184 = vmatprep.subr.mxu0 0.0
  %185 = vmatpush2.msra.mxu0 0.0
  %186 = vmatprep.subr.mxu0 0.0
  %187 = vmatpush2.msra.mxu0 0.0
  %188 = vmatprep.subr.mxu0 0.0
  %189 = vmatpush2.msra.mxu0 0.0
  %190 = vmatprep.subr.mxu0 0.0
  %191 = vmatpush2.msra.mxu0 0.0
  %192 = vmatprep.subr.mxu0 0.0
  %193 = vmatpush2.msra.mxu0 0.0
  %194 = vmatprep.subr.mxu0 0.0
  %195 = vmatpush2.msra.mxu0 0.0
  %196 = vmatprep.mubr.f32.mxu0 0.0
  %197 = vmatmul.mubr.f32.gmra.mxu0 %v130
  %v198 = vpop.f32.mrf.mxu0
  %v199 = vadd.f32 %v126, %v198
  %v200 = vpop.f32.mrf.mxu0
  %201 = vdwg.mxu0
  %202 = vst [vmem:[%s3] sm:$0xff] %v199
  // Predicated region
  $region14: #{convnext_downsample.1} parent=0 // pred_check
    _
  $region15: #{convnext_downsample.1} parent=0 // pred_check_branch
    %204 = sbr.rel (0) target = $region17
  $region16: #{convnext_downsample.1} parent=0 // pred_region
    _
  $region17: #{convnext_downsample.1} parent=0 // pred_fallthru
    _
  // Predicated region
  $region18: #{convnext_downsample.1} parent=0 // pred_check
    _
  $region19: #{convnext_downsample.1} parent=0 // pred_check_branch
    %206 = sbr.rel (0) target = $region21
  $region20: #{convnext_downsample.1} parent=0 // pred_region
    _
  $region21: #{convnext_downsample.1} parent=0 // pred_fallthru
    _

</llo_original>
